<compile_context>
chip_gen: v5e
topology: v5e:2x2
jax: 0.10.0
libtpu: 0.0.40
codegen_flags: <defaults>
</compile_context>

<pallas_src>
import jax
import jax.numpy as jnp
from jax.experimental import pallas as pl
from jax.experimental.pallas import tpu as pltpu


_SMALL_PROBLEM_ELEMS = 1 << 20  # below this, plain XLA beats pallas_call overhead


def _round_up(x, m):
    return (x + m - 1) // m * m


def _cdiv(a, b):
    return -(-a // b)


# ----------------------------------------------------------------------------
# Kernel: out = ent_half + ent_half * tanh(half_s - |sp_s - mid_s|)
#   with ent_half = 0.5*ent, {half_s, mid_s, sp_s} prescaled by 0.5*theta,
#   which equals ent * sigmoid(theta * (half - |sp - mid|)).
# ----------------------------------------------------------------------------
def _entropy_kernel(params_ref, sp_ref, out_ref):
    # params_ref : (TM, 4)   columns = [0.5*ent, 0.5*theta*mid, 0.5*theta*half, pad]
    # sp_ref     : (1, TS)   diagonal samples prescaled by 0.5*theta
    # out_ref    : (TM, TS)
    p = params_ref[...]                       # single small load
    ent_half = p[:, 0:1]                      # (TM, 1)
    mid_s = p[:, 1:2]                         # (TM, 1)
    half_s = p[:, 2:3]                        # (TM, 1)
    sp = sp_ref[...]                          # (1, TS)

    arg = half_s - jnp.abs(sp - mid_s)        # (TM, TS) broadcast, VPU only
    t = jnp.tanh(arg)                         # ONE EUP op per element
    out_ref[...] = (ent_half + ent_half * t).astype(out_ref.dtype)


# ----------------------------------------------------------------------------
# O(B*N) entropy prep (plain XLA; negligible next to the O(B*N*S) output)
# ----------------------------------------------------------------------------
def _prep(pd):
    x = pd[..., 0]                                   # (B, N) birth
    y = pd[..., 1]                                   # (B, N) death
    L = y - x + 0.0001                               # lifetimes
    l_sum = jnp.sum(L, axis=1, keepdims=True)        # (B, 1)
    LN = L / l_sum
    # guard the log so degenerate rows never produce NaN (forward-equal to
    # torch.where(LN > 0, -LN*log(LN), LN))
    ent = jnp.where(LN > 0.0, -LN * jnp.log(jnp.where(LN > 0.0, LN, 1.0)), LN)
    mid = 0.5 * (y + x)
    half = 0.5 * (y - x)
    return ent, mid, half


def _xla_forward(pd, sp, theta):
    ent, mid, half = _prep(pd)
    arg = half[..., None] - jnp.abs(sp[None] - mid[..., None])     # (B, N, S)
    return ent[..., None] * jax.nn.sigmoid(theta * arg)


# ----------------------------------------------------------------------------
# Tile selection
# ----------------------------------------------------------------------------
def _choose_tiles(BN, S_pad, block_rows):
    # Lane tile: a multiple of 128 that divides S_pad, capped at 1024 so large
    # S problems get a second parallel grid axis (v7x 2-TC) with no masked
    # partial stores and no extra lane padding.
    k = S_pad // 128
    d = max(dd for dd in range(1, 9) if k % dd == 0)
    ts = 128 * d
    # Row tile: big enough to amortize per-grid-step overhead, small enough
    # that the double-buffered output block stays well under v7x's 64 MiB
    # physical VMEM (budget ~16 MiB for the output stream).
    vmem_budget = 16 * 1024 * 1024
    tm_by_vmem = max(8, (vmem_budget // (2 * ts * 4)) // 8 * 8)
    tm = min(int(block_rows), tm_by_vmem, _round_up(BN, 8))
    tm = max(8, (tm // 8) * 8)
    return tm, ts


# ----------------------------------------------------------------------------
# Public wrapper (mirrors EntropyLayer.forward)
# ----------------------------------------------------------------------------
def entropy_layer(pd_points, sp, theta=10.0, block_rows=1024,
                  out_dtype=jnp.float32, force_pallas=False):
    """pd_points: list of (N, 2) arrays (equal N) or a (B, N, 2) array.
    sp: (1, S) diagonal samples (the learnable parameter).
    Returns a list of (N, S) arrays, one per batch element."""
    if isinstance(pd_points, (list, tuple)):
        pd = jnp.stack(pd_points, axis=0)
    else:
        pd = pd_points
    pd = pd.astype(jnp.float32)
    sp = sp.astype(jnp.float32)

    B, N, _ = pd.shape
    S = sp.shape[-1]
    BN = B * N
    theta = float(theta)

    # Small-problem fallback (fixed pallas_call + padding overhead dominates),
    # and theta < 0 would break the |.|-prescale folding used by the kernel.
    small = BN * S < _SMALL_PROBLEM_ELEMS
    if theta < 0.0 or (small and not force_pallas):
        out = _xla_forward(pd, sp, theta).astype(out_dtype)
        return [out[b] for b in range(B)]

    ent, mid, half = _prep(pd)

    # Fold theta and the tanh 1/2 into the O(B*N)+O(S) prep so the kernel has
    # no per-element scale multiply (this is NOT the same-size prescale
    # anti-pattern: these arrays are 1/S the size of the output).
    c = 0.5 * theta
    ent_half = 0.5 * ent
    mid_s = c * mid
    half_s = c * half
    sp_s = c * sp.reshape(1, S)

    S_pad = _round_up(S, 128)
    tm, ts = _choose_tiles(BN, S_pad, block_rows)
    bn_pad = _round_up(BN, tm)

    # Pack the three per-row scalars into one (bn_pad, 4) array -> one DMA.
    params = jnp.stack([ent_half, mid_s, half_s], axis=-1).reshape(BN, 3)
    params = jnp.pad(params, ((0, bn_pad - BN), (0, 1)))      # (bn_pad, 4)
    sp_pad = jnp.pad(sp_s, ((0, 0), (0, S_pad - S)))          # (1, S_pad)

    out = pl.pallas_call(
        _entropy_kernel,
        out_shape=jax.ShapeDtypeStruct((bn_pad, S_pad), out_dtype),
        grid=(bn_pad // tm, S_pad // ts),
        in_specs=[
            pl.BlockSpec((tm, 4), lambda i, j: (i, 0)),
            pl.BlockSpec((1, ts), lambda i, j: (0, j)),
        ],
        out_specs=pl.BlockSpec((tm, ts), lambda i, j: (i, j)),
        compiler_params=pltpu.CompilerParams(
            dimension_semantics=("parallel", "parallel"),
        ),
    )(params, sp_pad)

    out = out[:BN, :S].reshape(B, N, S)
    # keep the batched array end-to-end; unstack only at the API boundary
    return [out[b] for b in range(B)]


# ----------------------------------------------------------------------------
# Pure-JAX reference mirroring the PyTorch forward
# ----------------------------------------------------------------------------
def _reference(pd, sp, theta):
    outs = []
    for b in range(pd.shape[0]):
        inp = pd[b]
        X = inp[:, 0:1]
        Y = inp[:, 1:2]
        L = Y - X + 0.0001
        LN = L * (1.0 / jnp.sum(L[:, 0]))
        ent = jnp.where(LN > 0.0, -LN * jnp.log(LN), LN)
        sig = 1.0 / (1.0 + jnp.exp(-theta * (0.5 * (Y - X) - jnp.abs(sp - 0.5 * (Y + X)))))
        outs.append(ent * sig)
    return outs


if __name__ == "__main__":
    key = jax.random.PRNGKey(0)
    k_pd, k_sp = jax.random.split(key)

    # Small shapes consistent with the module: B point clouds, each with N
    # persistence points of dim 2; S diagonal samples.
    B, N, S = 2, 16, 100
    theta = 10.0

    # birth in [0, 0.5), death = birth + positive lifetime (valid PD points)
    births = jax.random.uniform(k_pd, (B, N, 1), minval=0.0, maxval=0.5)
    lifes = jax.random.uniform(jax.random.fold_in(k_pd, 1), (B, N, 1),
                               minval=0.05, maxval=0.5)
    pd = jnp.concatenate([births, births + lifes], axis=-1)      # (B, N, 2)

    # nn.Parameter(torch.rand(1, lsample_num)) -> uniform [0, 1)
    sp = jax.random.uniform(k_sp, (1, S), minval=0.0, maxval=1.0)

    pd_list = [pd[b] for b in range(B)]
    ref_list = _reference(pd, sp, theta)

    # Force the Pallas path at this small test size to exercise the kernel.
    out_list = entropy_layer(pd_list, sp, theta=theta, force_pallas=True)
    out_list = [jax.block_until_ready(o) for o in out_list]
    for o, r in zip(out_list, ref_list):
        assert o.shape == (N, S)
        assert jnp.allclose(o, r, atol=1e-4, rtol=1e-4), "pallas mismatch vs reference"

    # Also exercise the small-problem XLA fallback path.
    out_small = entropy_layer(pd_list, sp, theta=theta)
    out_small = [jax.block_until_ready(o) for o in out_small]
    for o, r in zip(out_small, ref_list):
        assert jnp.allclose(o, r, atol=1e-5, rtol=1e-5), "fallback mismatch vs reference"

    print("KERNEL_OK")
</pallas_src>

<mosaic_0001>
module attributes {stable_mosaic.version = 11 : i64} {
  func.func @_entropy_kernel(%arg0: i32, %arg1: i32, %arg2: memref<32x4xf32, #tpu.memory_space<vmem>>, %arg3: memref<1x128xf32, #tpu.memory_space<vmem>>, %arg4: memref<32x128xf32, #tpu.memory_space<vmem>>) attributes {dimension_semantics = [#tpu.dimension_semantics<parallel>, #tpu.dimension_semantics<parallel>], iteration_bounds = array<i64: 1, 1>, scalar_prefetch = 0 : i64, scratch_operands = 0 : i64, tpu.core_type = #tpu.core_type<tc>, window_params = [{transform_indices = @transform_0, window_bounds = array<i64: 32, 4>}, {transform_indices = @transform_1, window_bounds = array<i64: 1, 128>}, {transform_indices = @transform_2, window_bounds = array<i64: 32, 128>}]} {
    %c0 = arith.constant 0 : index
    %c0_0 = arith.constant 0 : index
    %0 = vector.load %arg2[%c0, %c0_0] : memref<32x4xf32, #tpu.memory_space<vmem>>, vector<32x4xf32>
    %1 = vector.extract_strided_slice %0 {offsets = [0, 0], sizes = [32, 1], strides = [1, 1]} : vector<32x4xf32> to vector<32x1xf32>
    %2 = vector.extract_strided_slice %0 {offsets = [0, 1], sizes = [32, 1], strides = [1, 1]} : vector<32x4xf32> to vector<32x1xf32>
    %3 = vector.extract_strided_slice %0 {offsets = [0, 2], sizes = [32, 1], strides = [1, 1]} : vector<32x4xf32> to vector<32x1xf32>
    %c0_1 = arith.constant 0 : index
    %c0_2 = arith.constant 0 : index
    %4 = vector.load %arg3[%c0_1, %c0_2] : memref<1x128xf32, #tpu.memory_space<vmem>>, vector<1x128xf32>
    %5 = vector.broadcast %4 : vector<1x128xf32> to vector<32x128xf32>
    %6 = vector.broadcast %2 : vector<32x1xf32> to vector<32x128xf32>
    %7 = arith.subf %5, %6 : vector<32x128xf32>
    %8 = math.absf %7 : vector<32x128xf32>
    %9 = vector.broadcast %3 : vector<32x1xf32> to vector<32x128xf32>
    %10 = arith.subf %9, %8 : vector<32x128xf32>
    %11 = math.tanh %10 : vector<32x128xf32>
    %12 = vector.broadcast %1 : vector<32x1xf32> to vector<32x128xf32>
    %13 = arith.mulf %12, %11 : vector<32x128xf32>
    %14 = vector.broadcast %1 : vector<32x1xf32> to vector<32x128xf32>
    %15 = arith.addf %14, %13 : vector<32x128xf32>
    %c0_3 = arith.constant 0 : index
    %c0_4 = arith.constant 0 : index
    %16 = vector.load %arg4[%c0_3, %c0_4] : memref<32x128xf32, #tpu.memory_space<vmem>>, vector<32x128xf32>
    tpu.vector_store %arg4[%c0_3, %c0_4], %15 {strides = array<i32>} : memref<32x128xf32, #tpu.memory_space<vmem>>, vector<32x128xf32>,
    return
  }
  func.func @transform_0(%arg0: i32, %arg1: i32) -> (i32, i32) {
    %c0_i32 = arith.constant 0 : i32
    %c0_i32_0 = arith.constant 0 : i32
    return %arg0, %c0_i32 : i32, i32
  }
  func.func @transform_1(%arg0: i32, %arg1: i32) -> (i32, i32) {
    %c0_i32 = arith.constant 0 : i32
    %c0_i32_0 = arith.constant 0 : i32
    return %c0_i32, %arg1 : i32, i32
  }
  func.func @transform_2(%arg0: i32, %arg1: i32) -> (i32, i32) {
    %c0_i32 = arith.constant 0 : i32
    return %arg0, %arg1 : i32, i32
  }
}

</mosaic_0001>

<llo_original>
// kernel: tpu_custom_call.1
$region0: #{tpu_custom_call.1}
  #allocation0 [shape = 'u32[]', space=smem, size = 0x4, offset = 0x4, fixed_abs, tag = 'smem constant byte address 0x4 - core index']
  #allocation1 [shape = 'u32[72,128]{1,0:T(1,128)}', space=vmem, size = 0x9000, scoped, tag = 'internal scratch']
  %s0 = inlined_call_operand.vmem [shape: f32[32,4], index: 0, kind: input, shape index: {}]
  %s1 = inlined_call_operand.vmem [shape: f32[1,128], index: 1, kind: input, shape index: {}]
  %s2 = inlined_call_operand.hbm [shape: f32[32,128], index: 2, kind: output, shape index: {}]
  %s3 = sld [smem:[#allocation0]]
  $region18: #{tpu_custom_call.1} parent=0
    _
  %s5 = ssub.s32 1, %s3
  %s6 = scalar_select 0, %s5, %s3
  $region1: #{tpu_custom_call.1} parent=0
    #allocation2 [shape = 'u8[16384]{0}', space=vmem, size = 0x4000, scoped, tag = 'output window, operand 0, single buffered']
    #allocation3 [shape = 's32[1]{0}', space=sflag, size = 0x4, scoped, tag = 'scoped memory for tpu_custom_call.1']
    %7 = vsyncpa [#allocation3], 0
    // Predicated region
    $region2: #{tpu_custom_call.1} parent=1 // pred_check
      _
    $region3: #{tpu_custom_call.1} parent=1 // pred_check_branch
      %9 = sbr.rel (0) target = $region5
    $region4: #{tpu_custom_call.1} parent=1 // pred_region
      _
    $region5: #{tpu_custom_call.1} parent=1 // pred_fallthru
      _
    // Predicated region
    $region6: #{tpu_custom_call.1} parent=1 // pred_check
      _
    $region7: #{tpu_custom_call.1} parent=1 // pred_check_branch
      %11 = sbr.rel (0) target = $region9
    $region8: #{tpu_custom_call.1} parent=1 // pred_region
      _
    $region9: #{tpu_custom_call.1} parent=1 // pred_fallthru
      _
    %v12 = vld [vmem:[%s0] sm:$0xff]
    %v13 = vld [vmem:[%s0 + $0x8] sm:$0xff]
    %v14 = vld [vmem:[%s0 + $0x10] sm:$0xff]
    %v15 = vld [vmem:[%s0 + $0x18] sm:$0xff]
    %v16 = vld [vmem:[%s1] sm:$0x1]
    %v18 = vperm.slane %v16, 0
    %21 = vset.pattern.permute.xlu0 1
    %22 = vperm.xlu0 %21, %v12
    %v23 = vpop.permute.xlu0 %22
    %26 = vset.pattern.permute.xlu0 1
    %27 = vperm.xlu0 %26, %v13
    %v28 = vpop.permute.xlu0 %27
    %31 = vset.pattern.permute.xlu0 1
    %32 = vperm.xlu0 %31, %v14
    %v33 = vpop.permute.xlu0 %32
    %36 = vset.pattern.permute.xlu0 1
    %37 = vperm.xlu0 %36, %v15
    %v38 = vpop.permute.xlu0 %37
    %v40 = vsub.f32 %v18, %v23
    %v41 = vsub.f32 %v18, %v28
    %v42 = vsub.f32 %v18, %v33
    %v43 = vsub.f32 %v18, %v38
    %v44 = vand.u32 2147483647, %v40
    %v45 = vand.u32 2147483647, %v41
    %v46 = vand.u32 2147483647, %v42
    %v47 = vand.u32 2147483647, %v43
    %48 = vset.pattern.permute.xlu0 2
    %49 = vperm.xlu0 %48, %v12
    %v50 = vpop.permute.xlu0 %49
    %52 = vset.pattern.permute.xlu0 2
    %53 = vperm.xlu0 %52, %v13
    %v54 = vpop.permute.xlu0 %53
    %56 = vset.pattern.permute.xlu0 2
    %57 = vperm.xlu0 %56, %v14
    %v58 = vpop.permute.xlu0 %57
    %60 = vset.pattern.permute.xlu0 2
    %61 = vperm.xlu0 %60, %v15
    %v62 = vpop.permute.xlu0 %61
    %v64 = vsub.f32 %v50, %v44
    %v65 = vsub.f32 %v54, %v45
    %v66 = vsub.f32 %v58, %v46
    %v67 = vsub.f32 %v62, %v47
    %v68 = vtanh.pop %v64
    %v69 = vtanh.pop %v65
    %v70 = vtanh.pop %v66
    %v71 = vtanh.pop %v67
    %72 = vset.pattern.permute.xlu0 0
    %73 = vperm.xlu0 %72, %v12
    %v74 = vpop.permute.xlu0 %73
    %76 = vset.pattern.permute.xlu0 0
    %77 = vperm.xlu0 %76, %v13
    %v78 = vpop.permute.xlu0 %77
    %80 = vset.pattern.permute.xlu0 0
    %81 = vperm.xlu0 %80, %v14
    %v82 = vpop.permute.xlu0 %81
    %84 = vset.pattern.permute.xlu0 0
    %85 = vperm.xlu0 %84, %v15
    %v86 = vpop.permute.xlu0 %85
    %v88 = vmul.f32 %v74, %v68
    %v89 = vmul.f32 %v78, %v69
    %v90 = vmul.f32 %v82, %v70
    %v91 = vmul.f32 %v86, %v71
    %v92 = vadd.f32 %v74, %v88
    %v93 = vadd.f32 %v78, %v89
    %v94 = vadd.f32 %v82, %v90
    %v95 = vadd.f32 %v86, %v91
    %96 = vst [vmem:[#allocation2] sm:$0xff] %v92
    %97 = vst [vmem:[#allocation2 + $0x8] sm:$0xff] %v93
    %98 = vst [vmem:[#allocation2 + $0x10] sm:$0xff] %v94
    %99 = vst [vmem:[#allocation2 + $0x18] sm:$0xff] %v95
    // Predicated region
    $region10: #{tpu_custom_call.1} parent=1 // pred_check
      _
    $region11: #{tpu_custom_call.1} parent=1 // pred_check_branch
      %101 = sbr.rel (0) target = $region13
    $region12: #{tpu_custom_call.1} parent=1 // pred_region
      %103 = vsyncadd [#allocation3], 0
      %s104 = sshll.u32 [#allocation2], 4
      %s105 = int_to_ptr.vmem [resolvable:$true] %s104
      %s106 = sshll.u32 %s2, 4
      %s107 = int_to_ptr.hbm [resolvable:$true] %s106
      %112 = dma.vmem_to_hbm [thread:$0]  %s105, 512, %s107, [#allocation3], 128, 128, 8
    $region13: #{tpu_custom_call.1} parent=1 // pred_fallthru
      _
    // Predicated region
    $region14: #{tpu_custom_call.1} parent=1 // pred_check
      _
    $region15: #{tpu_custom_call.1} parent=1 // pred_check_branch
      %114 = sbr.rel (0) target = $region17
    $region16: #{tpu_custom_call.1} parent=1 // pred_region
      %116 = dma.done [#allocation3], 512
    $region17: #{tpu_custom_call.1} parent=1 // pred_fallthru
      _
    %117 = vsyncpa [#allocation3], 1

</llo_original>
